<compile_context>
chip_gen: v6e
topology: v6e:2x2x1
jax: 0.10.0
libtpu: 0.0.40
codegen_flags: <defaults>
</compile_context>

<pallas_src>
import jax
import jax.numpy as jnp
from jax.experimental import pallas as pl
from jax.experimental.pallas import tpu as pltpu


# --------------------------------------------------------------------------
# Pallas kernel: full Critic forward for one graph per grid step.
# --------------------------------------------------------------------------
def critic_kernel(xd_ref, at_ref, fp_ref, wb_ref, out_ref):
    f32, bf16 = jnp.float32, jnp.bfloat16
    g = pl.program_id(0)

    xd = xd_ref[0]                        # (N, 2) f32: [x, out_degree]
    at = at_ref[0]                        # (N, N) bf16, AT[t, s] = #edges s->t
    n_nodes = float(at.shape[0])

    x = xd[:, 0:1]                        # (N, 1)
    deg_out = xd[:, 1:2]                  # (N, 1)
    in_deg = jnp.sum(at.astype(f32), axis=1, keepdims=True)        # (N, 1)

    # ---- parameter slab views (static slices -> zero-cost) ----
    w1t_x = fp_ref[0:1, :]                # (1, 128) GCN weights for feature x
    w1t_d = fp_ref[1:2, :]                # (1, 128) GCN weights for feature deg
    b1    = fp_ref[2:3, :]                # (1, 128)
    bl    = fp_ref[3:4, :]                # (1, 128)
    bv1   = fp_ref[4:5, :]                # (1, 128), lanes >= 64 are 0
    wv2   = fp_ref[5:6, :]                # (1, 128), lanes >= 64 are 0
    bv2   = fp_ref[6:7, 0:1]              # (1, 1)
    wlt   = wb_ref[0:128, :]              # (128, 128) bf16  SAGE lin_l^T
    wrt   = wb_ref[128:256, :]            # (128, 128) bf16  SAGE lin_r^T
    wv1t  = wb_ref[256:384, :]            # (128, 128) bf16, columns >= 64 are 0

    # ---- GCNConv(2,128): self-loop folded, symmetric normalization ----
    # (AT + I) @ y == AT @ y + y ;  dhat = in_deg + 1
    dinv = jax.lax.rsqrt(in_deg + 1.0)                              # (N, 1)
    z = x * w1t_x + deg_out * w1t_d       # x_cat @ W1^T as two outer products (VPU)
    y = dinv * z                          # (N, 128) f32
    ay = jnp.dot(at, y.astype(bf16), preferred_element_type=f32)   # bf16 MXU
    a1 = jnp.maximum(dinv * (ay + y) + b1, 0.0)                    # ReLU

    # ---- SAGEConv(128,128): mean neighbor aggregation + root weight ----
    inv_in = pl.reciprocal(jnp.maximum(in_deg, 1.0), approx=True)  # (N,1) on EUP
    a1_bf = a1.astype(bf16)
    agg = jnp.dot(at, a1_bf, preferred_element_type=f32) * inv_in  # (N, 128)
    a2 = (jnp.dot(agg.astype(bf16), wlt, preferred_element_type=f32) + bl
          + jnp.dot(a1_bf, wrt, preferred_element_type=f32))

    # ---- value head: Linear(128,64) -> ReLU, node-sum BEFORE final linear ----
    v = jnp.maximum(
        jnp.dot(a2.astype(bf16), wv1t, preferred_element_type=f32) + bv1, 0.0)
    s = jnp.sum(v, axis=0, keepdims=True)                          # (1, 128)
    # sum_i (v_i @ wv2^T + bv2) == (sum_i v_i) . wv2 + N * bv2
    val = jnp.sum(s * wv2, axis=1, keepdims=True) + n_nodes * bv2  # (1, 1)

    # ---- lane-dense (1, GPAD) output row, VMEM-resident across the grid ----
    @pl.when(g == 0)
    def _():
        out_ref[...] = jnp.zeros_like(out_ref)
    lane = jax.lax.broadcasted_iota(jnp.int32, out_ref.shape, 1)
    out_ref[...] = jnp.where(lane == g, val, out_ref[...])


# --------------------------------------------------------------------------
# Wrapper: batched over G graphs.  x: (G, N, 1) f32, edge_index: (G, 2, E) i32.
# --------------------------------------------------------------------------
def critic_forward(x, edge_index, num_nodes, params):
    G = x.shape[0]
    N = num_nodes
    src, dst = edge_index[:, 0, :], edge_index[:, 1, :]

    # Dense transposed adjacency AT[t, s] and out-degree, per graph.
    # NOTE: this XLA scatter dominates end-to-end time at toy sizes; in
    # production cache AT across critic calls, or pass the edge list via
    # PrefetchScalarGridSpec and gather rows inside the kernel for large N.
    def build(src_g, dst_g):
        at = jnp.zeros((N, N), jnp.float32).at[dst_g, src_g].add(1.0)
        deg = jnp.zeros((N,), jnp.float32).at[src_g].add(1.0)
        return at, deg
    AT, deg_out = jax.vmap(build)(src, dst)
    AT = AT.astype(jnp.bfloat16)                       # exact for small edge counts
    xd = jnp.concatenate([x.astype(jnp.float32), deg_out[..., None]], axis=-1)

    def pad128(v):
        return jnp.pad(v, (0, 128 - v.shape[0]))

    # f32 parameter slab: (8, 128) == one vreg.
    fp = jnp.stack([
        params["w1"].T[0], params["w1"].T[1],          # GCNConv weight rows
        params["b1"], params["bl"],                    # GCN / SAGE biases
        pad128(params["bv1"]), pad128(params["wv2"][0]),
        pad128(params["bv2"]), jnp.zeros((128,), jnp.float32),
    ]).astype(jnp.float32)                             # (8, 128)

    # bf16 weight slab: [wl^T ; wr^T ; wv1^T | 0] -> (384, 128).
    wv1t = jnp.pad(params["wv1"].T, ((0, 0), (0, 64)))             # (128, 128)
    wb = jnp.concatenate([params["wl"].T, params["wr"].T, wv1t],
                         axis=0).astype(jnp.bfloat16)              # (384, 128)

    GPAD = pl.cdiv(G, 128) * 128                       # lane-dense output row

    out = pl.pallas_call(
        critic_kernel,
        out_shape=jax.ShapeDtypeStruct((1, GPAD), jnp.float32),
        grid=(G,),
        in_specs=[
            pl.BlockSpec((1, N, 2), lambda g: (g, 0, 0)),    # per-graph features
            pl.BlockSpec((1, N, N), lambda g: (g, 0, 0)),    # per-graph adjacency
            pl.BlockSpec((8, 128), lambda g: (0, 0)),        # f32 slab (VMEM-resident)
            pl.BlockSpec((384, 128), lambda g: (0, 0)),      # bf16 slab (VMEM-resident)
        ],
        out_specs=pl.BlockSpec((1, GPAD), lambda g: (0, 0)),
        compiler_params=pltpu.CompilerParams(
            dimension_semantics=("arbitrary",)),       # output row shared across graphs
    )(xd, AT, fp, wb)
    return out[0, :G]


# --------------------------------------------------------------------------
# Pure-JAX f32 reference for ONE graph (mirrors PyG GCNConv / SAGEConv).
# --------------------------------------------------------------------------
def critic_reference(x, edge_index, num_nodes, params):
    N = num_nodes
    src, dst = edge_index[0], edge_index[1]
    A = jnp.zeros((N, N), jnp.float32).at[src, dst].add(1.0)
    AT = A.T
    eye = jnp.eye(N, dtype=jnp.float32)

    deg_out = jnp.sum(A, axis=1, keepdims=True)
    x2 = jnp.concatenate([x.astype(jnp.float32), deg_out], axis=-1)

    ahat_t = AT + eye
    dhat = jnp.sum(ahat_t, axis=1, keepdims=True)
    dinv = 1.0 / jnp.sqrt(dhat)
    h = dinv * (ahat_t @ (dinv * (x2 @ params["w1"].T))) + params["b1"]
    a1 = jax.nn.relu(h)

    in_deg = jnp.sum(AT, axis=1, keepdims=True)
    agg = (AT @ a1) / jnp.maximum(in_deg, 1.0)
    a2 = agg @ params["wl"].T + params["bl"] + a1 @ params["wr"].T

    v = jax.nn.relu(a2 @ params["wv1"].T + params["bv1"])
    v = v @ params["wv2"].T + params["bv2"]
    return jnp.sum(v)


def init_params(key):
    ks = jax.random.split(key, 8)
    s = 0.1
    return {
        "w1":  jax.random.normal(ks[0], (128, 2),   jnp.float32) * s,  # GCNConv lin
        "b1":  jax.random.normal(ks[1], (128,),     jnp.float32) * s,
        "wl":  jax.random.normal(ks[2], (128, 128), jnp.float32) * s,  # SAGE lin_l
        "bl":  jax.random.normal(ks[3], (128,),     jnp.float32) * s,
        "wr":  jax.random.normal(ks[4], (128, 128), jnp.float32) * s,  # SAGE lin_r
        "wv1": jax.random.normal(ks[5], (64, 128),  jnp.float32) * s,  # value1
        "bv1": jax.random.normal(ks[6], (64,),      jnp.float32) * s,
        "wv2": jax.random.normal(ks[7], (1, 64),    jnp.float32) * s,  # value2
        "bv2": jnp.zeros((1,), jnp.float32),
    }


if __name__ == "__main__":
    key = jax.random.PRNGKey(0)
    k_x, k_p = jax.random.split(key)

    # Small batch of synthetic graphs: G=4 graphs, N=16 nodes, 24 directed edges.
    G, N = 4, 16
    edge_lists = []
    for g in range(G):
        edges = [(i, (i + 1) % N) for i in range(N)]                # ring
        edges += [(i, (i + 3 + g) % N) for i in range(0, N, 2)]     # graph-dependent chords
        edge_lists.append(edges)
    edge_index = jnp.array(
        [[[e[0] for e in el], [e[1] for e in el]] for el in edge_lists],
        dtype=jnp.int32)                                            # (G, 2, 24)

    x = jax.random.normal(k_x, (G, N, 1), jnp.float32)              # state.x per graph
    params = init_params(k_p)

    values = critic_forward(x, edge_index, N, params)               # (G,)
    values = jax.block_until_ready(values)

    refs = jnp.stack([critic_reference(x[g], edge_index[g], N, params)
                      for g in range(G)])
    # Tolerance relaxed vs. the f32 reference: adjacency + 128-wide GEMMs run
    # with bf16 MXU operands (f32 accumulation) and the SAGE mean uses the
    # approximate EUP reciprocal.
    assert jnp.allclose(values, refs, rtol=5e-2, atol=5e-2), (values, refs)

    print("KERNEL_OK")
</pallas_src>

<mosaic_0001>
module attributes {stable_mosaic.version = 11 : i64} {
  func.func @critic_kernel(%arg0: i32, %arg1: memref<1x16x2xf32, #tpu.memory_space<vmem>>, %arg2: memref<1x16x16xbf16, #tpu.memory_space<vmem>>, %arg3: memref<8x128xf32, #tpu.memory_space<vmem>>, %arg4: memref<384x128xbf16, #tpu.memory_space<vmem>>, %arg5: memref<1x128xf32, #tpu.memory_space<vmem>>) attributes {dimension_semantics = [#tpu.dimension_semantics<arbitrary>], iteration_bounds = array<i64: 4>, scalar_prefetch = 0 : i64, scratch_operands = 0 : i64, tpu.core_type = #tpu.core_type<tc>, window_params = [{transform_indices = @transform_0, window_bounds = array<i64: 1, 16, 2>}, {transform_indices = @transform_1, window_bounds = array<i64: 1, 16, 16>}, {pipeline_mode = #tpu.pipeline_mode<synchronous>, transform_indices = @transform_2, window_bounds = array<i64: 8, 128>}, {pipeline_mode = #tpu.pipeline_mode<synchronous>, transform_indices = @transform_3, window_bounds = array<i64: 384, 128>}, {pipeline_mode = #tpu.pipeline_mode<synchronous>, transform_indices = @transform_4, window_bounds = array<i64: 1, 128>}]} {
    %c0 = arith.constant 0 : index
    %c0_0 = arith.constant 0 : index
    %c0_1 = arith.constant 0 : index
    %0 = vector.load %arg1[%c0, %c0_0, %c0_1] : memref<1x16x2xf32, #tpu.memory_space<vmem>>, vector<1x16x2xf32>
    %1 = vector.shape_cast %0 : vector<1x16x2xf32> to vector<16x2xf32>
    %c0_2 = arith.constant 0 : index
    %c0_3 = arith.constant 0 : index
    %c0_4 = arith.constant 0 : index
    %2 = vector.load %arg2[%c0_2, %c0_3, %c0_4] : memref<1x16x16xbf16, #tpu.memory_space<vmem>>, vector<1x16x16xbf16>
    %3 = vector.shape_cast %2 : vector<1x16x16xbf16> to vector<16x16xbf16>
    %4 = vector.extract_strided_slice %1 {offsets = [0, 0], sizes = [16, 1], strides = [1, 1]} : vector<16x2xf32> to vector<16x1xf32>
    %5 = vector.extract_strided_slice %1 {offsets = [0, 1], sizes = [16, 1], strides = [1, 1]} : vector<16x2xf32> to vector<16x1xf32>
    %6 = arith.extf %3 : vector<16x16xbf16> to vector<16x16xf32>
    %cst = arith.constant dense<0.000000e+00> : vector<16xf32>
    %7 = vector.multi_reduction <add>, %6, %cst [1] : vector<16x16xf32> to vector<16xf32>
    %8 = vector.shape_cast %7 : vector<16xf32> to vector<16x1xf32>
    %c0_5 = arith.constant 0 : index
    %c0_6 = arith.constant 0 : index
    %9 = vector.load %arg3[%c0_5, %c0_6] : memref<8x128xf32, #tpu.memory_space<vmem>>, vector<1x128xf32>
    %c1 = arith.constant 1 : index
    %c0_7 = arith.constant 0 : index
    %10 = vector.load %arg3[%c1, %c0_7] : memref<8x128xf32, #tpu.memory_space<vmem>>, vector<1x128xf32>
    %c2 = arith.constant 2 : index
    %c0_8 = arith.constant 0 : index
    %11 = vector.load %arg3[%c2, %c0_8] : memref<8x128xf32, #tpu.memory_space<vmem>>, vector<1x128xf32>
    %c3 = arith.constant 3 : index
    %c0_9 = arith.constant 0 : index
    %12 = vector.load %arg3[%c3, %c0_9] : memref<8x128xf32, #tpu.memory_space<vmem>>, vector<1x128xf32>
    %c4 = arith.constant 4 : index
    %c0_10 = arith.constant 0 : index
    %13 = vector.load %arg3[%c4, %c0_10] : memref<8x128xf32, #tpu.memory_space<vmem>>, vector<1x128xf32>
    %c5 = arith.constant 5 : index
    %c0_11 = arith.constant 0 : index
    %14 = vector.load %arg3[%c5, %c0_11] : memref<8x128xf32, #tpu.memory_space<vmem>>, vector<1x128xf32>
    %c6 = arith.constant 6 : index
    %c0_12 = arith.constant 0 : index
    %15 = vector.load %arg3[%c6, %c0_12] : memref<8x128xf32, #tpu.memory_space<vmem>>, vector<1x1xf32>
    %c0_13 = arith.constant 0 : index
    %c0_14 = arith.constant 0 : index
    %16 = vector.load %arg4[%c0_13, %c0_14] : memref<384x128xbf16, #tpu.memory_space<vmem>>, vector<128x128xbf16>
    %c128 = arith.constant 128 : index
    %c0_15 = arith.constant 0 : index
    %17 = vector.load %arg4[%c128, %c0_15] : memref<384x128xbf16, #tpu.memory_space<vmem>>, vector<128x128xbf16>
    %c256 = arith.constant 256 : index
    %c0_16 = arith.constant 0 : index
    %18 = vector.load %arg4[%c256, %c0_16] : memref<384x128xbf16, #tpu.memory_space<vmem>>, vector<128x128xbf16>
    %cst_17 = arith.constant 1.000000e+00 : f32
    %19 = vector.broadcast %cst_17 : f32 to vector<16x1xf32>
    %20 = arith.addf %8, %19 : vector<16x1xf32>
    %21 = math.rsqrt %20 : vector<16x1xf32>
    %22 = vector.broadcast %4 : vector<16x1xf32> to vector<16x128xf32>
    %23 = vector.broadcast %9 : vector<1x128xf32> to vector<16x128xf32>
    %24 = arith.mulf %22, %23 : vector<16x128xf32>
    %25 = vector.broadcast %5 : vector<16x1xf32> to vector<16x128xf32>
    %26 = vector.broadcast %10 : vector<1x128xf32> to vector<16x128xf32>
    %27 = arith.mulf %25, %26 : vector<16x128xf32>
    %28 = arith.addf %24, %27 : vector<16x128xf32>
    %29 = vector.broadcast %21 : vector<16x1xf32> to vector<16x128xf32>
    %30 = arith.mulf %29, %28 : vector<16x128xf32>
    %31 = arith.truncf %30 : vector<16x128xf32> to vector<16x128xbf16>
    %cst_18 = arith.constant dense<0.000000e+00> : vector<16x128xf32>
    %32 = tpu.matmul %3, %31, %cst_18 {dimension_numbers = #tpu.dot_dimension_numbers<[1], [0], [0], [1], [0, 0, 1, 1], [], []>} : vector<16x16xbf16>, vector<16x128xbf16>, vector<16x128xf32> -> vector<16x128xf32>
    %33 = arith.addf %32, %30 : vector<16x128xf32>
    %34 = vector.broadcast %21 : vector<16x1xf32> to vector<16x128xf32>
    %35 = arith.mulf %34, %33 : vector<16x128xf32>
    %36 = vector.broadcast %11 : vector<1x128xf32> to vector<16x128xf32>
    %37 = arith.addf %35, %36 : vector<16x128xf32>
    %cst_19 = arith.constant 0.000000e+00 : f32
    %38 = vector.broadcast %cst_19 : f32 to vector<16x128xf32>
    %39 = arith.maximumf %37, %38 : vector<16x128xf32>
    %cst_20 = arith.constant 1.000000e+00 : f32
    %40 = vector.broadcast %cst_20 : f32 to vector<16x1xf32>
    %41 = arith.maximumf %8, %40 : vector<16x1xf32>
    %42 = tpu.reciprocal %41 {approx = true} : vector<16x1xf32> -> vector<16x1xf32>
    %43 = arith.truncf %39 : vector<16x128xf32> to vector<16x128xbf16>
    %cst_21 = arith.constant dense<0.000000e+00> : vector<16x128xf32>
    %44 = tpu.matmul %3, %43, %cst_21 {dimension_numbers = #tpu.dot_dimension_numbers<[1], [0], [0], [1], [0, 0, 1, 1], [], []>} : vector<16x16xbf16>, vector<16x128xbf16>, vector<16x128xf32> -> vector<16x128xf32>
    %45 = vector.broadcast %42 : vector<16x1xf32> to vector<16x128xf32>
    %46 = arith.mulf %44, %45 : vector<16x128xf32>
    %47 = arith.truncf %46 : vector<16x128xf32> to vector<16x128xbf16>
    %cst_22 = arith.constant dense<0.000000e+00> : vector<16x128xf32>
    %48 = tpu.matmul %47, %16, %cst_22 {dimension_numbers = #tpu.dot_dimension_numbers<[1], [0], [0], [1], [0, 0, 1, 1], [], []>} : vector<16x128xbf16>, vector<128x128xbf16>, vector<16x128xf32> -> vector<16x128xf32>
    %49 = vector.broadcast %12 : vector<1x128xf32> to vector<16x128xf32>
    %50 = arith.addf %48, %49 : vector<16x128xf32>
    %cst_23 = arith.constant dense<0.000000e+00> : vector<16x128xf32>
    %51 = tpu.matmul %43, %17, %cst_23 {dimension_numbers = #tpu.dot_dimension_numbers<[1], [0], [0], [1], [0, 0, 1, 1], [], []>} : vector<16x128xbf16>, vector<128x128xbf16>, vector<16x128xf32> -> vector<16x128xf32>
    %52 = arith.addf %50, %51 : vector<16x128xf32>
    %53 = arith.truncf %52 : vector<16x128xf32> to vector<16x128xbf16>
    %cst_24 = arith.constant dense<0.000000e+00> : vector<16x128xf32>
    %54 = tpu.matmul %53, %18, %cst_24 {dimension_numbers = #tpu.dot_dimension_numbers<[1], [0], [0], [1], [0, 0, 1, 1], [], []>} : vector<16x128xbf16>, vector<128x128xbf16>, vector<16x128xf32> -> vector<16x128xf32>
    %55 = vector.broadcast %13 : vector<1x128xf32> to vector<16x128xf32>
    %56 = arith.addf %54, %55 : vector<16x128xf32>
    %cst_25 = arith.constant 0.000000e+00 : f32
    %57 = vector.broadcast %cst_25 : f32 to vector<16x128xf32>
    %58 = arith.maximumf %56, %57 : vector<16x128xf32>
    %cst_26 = arith.constant dense<0.000000e+00> : vector<128xf32>
    %59 = vector.multi_reduction <add>, %58, %cst_26 [0] : vector<16x128xf32> to vector<128xf32>
    %60 = vector.shape_cast %59 : vector<128xf32> to vector<1x128xf32>
    %61 = arith.mulf %60, %14 : vector<1x128xf32>
    %cst_27 = arith.constant dense<0.000000e+00> : vector<1xf32>
    %62 = vector.multi_reduction <add>, %61, %cst_27 [1] : vector<1x128xf32> to vector<1xf32>
    %63 = vector.shape_cast %62 : vector<1xf32> to vector<1x1xf32>
    %cst_28 = arith.constant 1.600000e+01 : f32
    %64 = vector.broadcast %cst_28 : f32 to vector<1x1xf32>
    %65 = arith.mulf %64, %15 : vector<1x1xf32>
    %66 = arith.addf %63, %65 : vector<1x1xf32>
    %c0_i32 = arith.constant 0 : i32
    %67 = arith.cmpi eq, %arg0, %c0_i32 : i32
    %68 = arith.extui %67 : i1 to i32
    %c0_i32_29 = arith.constant 0 : i32
    %69 = arith.cmpi ne, %68, %c0_i32_29 : i32
    scf.if %69 {
      %cst_34 = arith.constant 0.000000e+00 : f32
      %78 = vector.broadcast %cst_34 : f32 to vector<1x128xf32>
      %c0_35 = arith.constant 0 : index
      %c0_36 = arith.constant 0 : index
      %79 = vector.load %arg5[%c0_35, %c0_36] : memref<1x128xf32, #tpu.memory_space<vmem>>, vector<1x128xf32>
      tpu.vector_store %arg5[%c0_35, %c0_36], %78 {strides = array<i32>} : memref<1x128xf32, #tpu.memory_space<vmem>>, vector<1x128xf32>,
    } else {
    }
    %70 = tpu.iota {dimensions = array<i32: 1>} : vector<1x128xi32>
    %71 = vector.broadcast %arg0 : i32 to vector<1x128xi32>
    %72 = arith.cmpi eq, %70, %71 : vector<1x128xi32>
    %c0_30 = arith.constant 0 : index
    %c0_31 = arith.constant 0 : index
    %73 = vector.load %arg5[%c0_30, %c0_31] : memref<1x128xf32, #tpu.memory_space<vmem>>, vector<1x128xf32>
    %74 = vector.shape_cast %66 : vector<1x1xf32> to vector<1x1xf32>
    %75 = vector.broadcast %74 : vector<1x1xf32> to vector<1x128xf32>
    %76 = arith.select %72, %75, %73 : vector<1x128xi1>, vector<1x128xf32>
    %c0_32 = arith.constant 0 : index
    %c0_33 = arith.constant 0 : index
    %77 = vector.load %arg5[%c0_32, %c0_33] : memref<1x128xf32, #tpu.memory_space<vmem>>, vector<1x128xf32>
    tpu.vector_store %arg5[%c0_32, %c0_33], %76 {strides = array<i32>} : memref<1x128xf32, #tpu.memory_space<vmem>>, vector<1x128xf32>,
    return
  }
  func.func @transform_0(%arg0: i32) -> (i32, i32, i32) {
    %c0_i32 = arith.constant 0 : i32
    %c0_i32_0 = arith.constant 0 : i32
    %c0_i32_1 = arith.constant 0 : i32
    return %arg0, %c0_i32, %c0_i32_0 : i32, i32, i32
  }
  func.func @transform_1(%arg0: i32) -> (i32, i32, i32) {
    %c0_i32 = arith.constant 0 : i32
    %c0_i32_0 = arith.constant 0 : i32
    %c0_i32_1 = arith.constant 0 : i32
    return %arg0, %c0_i32, %c0_i32_0 : i32, i32, i32
  }
  func.func @transform_2(%arg0: i32) -> (i32, i32) {
    %c0_i32 = arith.constant 0 : i32
    %c0_i32_0 = arith.constant 0 : i32
    %c0_i32_1 = arith.constant 0 : i32
    return %c0_i32, %c0_i32_0 : i32, i32
  }
  func.func @transform_3(%arg0: i32) -> (i32, i32) {
    %c0_i32 = arith.constant 0 : i32
    %c0_i32_0 = arith.constant 0 : i32
    %c0_i32_1 = arith.constant 0 : i32
    return %c0_i32, %c0_i32_0 : i32, i32
  }
  func.func @transform_4(%arg0: i32) -> (i32, i32) {
    %c0_i32 = arith.constant 0 : i32
    %c0_i32_0 = arith.constant 0 : i32
    %c0_i32_1 = arith.constant 0 : i32
    return %c0_i32, %c0_i32_0 : i32, i32
  }
}

</mosaic_0001>

<llo_original>
// kernel: tpu_custom_call.1
$region0: #{tpu_custom_call.1}
  #allocation0 [shape = 'u32[]', space=smem, size = 0x4, offset = 0x4, fixed_abs, tag = 'smem constant byte address 0x4 - core index']
  #allocation1 [shape = 'u32[144,128]{1,0:T(1,128)}', space=vmem, size = 0x12000, scoped, tag = 'internal scratch']
  %s0 = inlined_call_operand.vmem [shape: f32[4,16,2], index: 0, kind: input, shape index: {}]
  %s1 = inlined_call_operand.vmem [shape: bf16[4,16,16], index: 1, kind: input, shape index: {}]
  %s2 = inlined_call_operand.vmem [shape: f32[8,128], index: 2, kind: input, shape index: {}]
  %s3 = inlined_call_operand.hbm [shape: bf16[384,128], index: 3, kind: input, shape index: {}]
  %s4 = inlined_call_operand.hbm [shape: f32[1,128], index: 4, kind: output, shape index: {}]
  %s5 = sld [smem:[#allocation0]]
  $region57: #{tpu_custom_call.1} parent=0
    _
  %s7 = ssub.s32 1, %s5
  %s8 = scalar_select 0, %s7, %s5
  $region1: #{tpu_custom_call.1} parent=0
    #allocation2 [shape = 'u8[98304]{0}', space=vmem, size = 0x18000, scoped, tag = 'input window, operand 3, single buffered']
    #allocation3 [shape = 's32[2]{0}', space=sflag, size = 0x8, scoped, tag = 'scoped memory for tpu_custom_call.1']
    #allocation4 [shape = 's32[2]{0}', space=sflag, size = 0x8, scoped, tag = 'scoped memory for tpu_custom_call.1']
    #allocation5 [shape = 'u8[512]{0}', space=vmem, size = 0x400, scoped, tag = 'output window, operand 0, single buffered']
    %9 = vsyncpa [#allocation3], 0
    %10 = vsyncpa [#allocation4], 0
    loop: start=0, step=1, limit=6
    $region2: #{tpu_custom_call.1} parent=1 // loop_pre_header
      _
    $region3: #{tpu_custom_call.1} parent=1 // loop_header
      %s12 = sphi 0, %s16
      %p13 = scmp.ge.s32.totalorder %s12, 6
      %s22 = sphi 0, %s24
      %s25 = sphi 0, %s22
      %s26 = sphi 0, %s25
      %s42 = sphi 0, %s26
      %s48 = sphi 0, %s50
      %s51 = sphi 0, %s48
      %s52 = sphi 0, %s51
      %s68 = sphi 0, %s52
      %s72 = sphi 0, %s72
      %s74 = sphi 0, %s72
      %s75 = sphi 0, %s74
      %s89 = sphi 0, %s75
      %s93 = sphi 0, %s93
      %s95 = sphi 0, %s93
      %s96 = sphi 0, %s95
      %s110 = sphi 0, %s96
      %s114 = sphi 0, %s114
      %s116 = sphi 0, %s114
      %s117 = sphi 0, %s116
      %s131 = sphi 0, %s117
    $region4: #{tpu_custom_call.1} parent=1 // loop_header_branch
      %15 = sbr.rel (%p13) target = $region8
    $region5: #{tpu_custom_call.1} parent=1 // loop_body
      %s17 = ssub.s32 %s12, 1
      %s18 = ssub.s32 %s12, 2
      %s19 = sadd.s32 %s12, 1
      %s20 = ssub.s32 %s12, %s19
      %p21 = scmp.eq.s32.totalorder %s20, 0
      %s23 = sadd.s32 %s22, 1
      %s24 = scalar_select %p21, %s22, %s23
      %p27 = pneg %p21
      %p28 = scmp.eq.s32.totalorder %s12, 3
      %p29 = por %p27, %p28
      %p30 = scmp.ne.s32.totalorder %s22, %s25
      %p31 = scmp.eq.s32.totalorder %s12, 0
      %p32 = por %p30, %p31
      %p33 = scmp.ne.s32.totalorder %s22, %s25
      %p34 = scmp.eq.s32.totalorder %s17, 3
      %p35 = por %p33, %p34
      %p36 = scmp.ne.s32.totalorder %s25, %s26
      %p37 = scmp.eq.s32.totalorder %s17, 0
      %p38 = por %p36, %p37
      %p39 = scmp.ne.s32.totalorder %s25, %s26
      %p40 = scmp.eq.s32.totalorder %s18, 3
      %p41 = por %p39, %p40
      %p43 = scmp.ne.s32.totalorder %s26, %s42
      %p44 = scmp.eq.s32.totalorder %s18, 0
      %p45 = por %p43, %p44
      %s46 = ssub.s32 %s12, %s19
      %p47 = scmp.eq.s32.totalorder %s46, 0
      %s49 = sadd.s32 %s48, 1
      %s50 = scalar_select %p47, %s48, %s49
      %p53 = pneg %p47
      %p54 = scmp.eq.s32.totalorder %s12, 3
      %p55 = por %p53, %p54
      %p56 = scmp.ne.s32.totalorder %s48, %s51
      %p57 = scmp.eq.s32.totalorder %s12, 0
      %p58 = por %p56, %p57
      %p59 = scmp.ne.s32.totalorder %s48, %s51
      %p60 = scmp.eq.s32.totalorder %s17, 3
      %p61 = por %p59, %p60
      %p62 = scmp.ne.s32.totalorder %s51, %s52
      %p63 = scmp.eq.s32.totalorder %s17, 0
      %p64 = por %p62, %p63
      %p65 = scmp.ne.s32.totalorder %s51, %s52
      %p66 = scmp.eq.s32.totalorder %s18, 3
      %p67 = por %p65, %p66
      %p69 = scmp.ne.s32.totalorder %s52, %s68
      %p70 = scmp.eq.s32.totalorder %s18, 0
      %p71 = por %p69, %p70
      %s73 = sadd.s32 %s72, 1
      %p76 = scmp.eq.s32.totalorder %s12, 3
      %p77 = scmp.ne.s32.totalorder %s72, %s74
      %p78 = scmp.eq.s32.totalorder %s12, 0
      %p79 = por %p77, %p78
      %p80 = scmp.ne.s32.totalorder %s72, %s74
      %p81 = scmp.eq.s32.totalorder %s17, 3
      %p82 = por %p80, %p81
      %p83 = scmp.ne.s32.totalorder %s74, %s75
      %p84 = scmp.eq.s32.totalorder %s17, 0
      %p85 = por %p83, %p84
      %p86 = scmp.ne.s32.totalorder %s74, %s75
      %p87 = scmp.eq.s32.totalorder %s18, 3
      %p88 = por %p86, %p87
      %p90 = scmp.ne.s32.totalorder %s75, %s89
      %p91 = scmp.eq.s32.totalorder %s18, 0
      %p92 = por %p90, %p91
      %s94 = sadd.s32 %s93, 1
      %p97 = scmp.eq.s32.totalorder %s12, 3
      %p98 = scmp.ne.s32.totalorder %s93, %s95
      %p99 = scmp.eq.s32.totalorder %s12, 0
      %p100 = por %p98, %p99
      %p101 = scmp.ne.s32.totalorder %s93, %s95
      %p102 = scmp.eq.s32.totalorder %s17, 3
      %p103 = por %p101, %p102
      %p104 = scmp.ne.s32.totalorder %s95, %s96
      %p105 = scmp.eq.s32.totalorder %s17, 0
      %p106 = por %p104, %p105
      %p107 = scmp.ne.s32.totalorder %s95, %s96
      %p108 = scmp.eq.s32.totalorder %s18, 3
      %p109 = por %p107, %p108
      %p111 = scmp.ne.s32.totalorder %s96, %s110
      %p112 = scmp.eq.s32.totalorder %s18, 0
      %p113 = por %p111, %p112
      %s115 = sadd.s32 %s114, 1
      %p118 = scmp.eq.s32.totalorder %s12, 3
      %p119 = scmp.ne.s32.totalorder %s114, %s116
      %p120 = scmp.eq.s32.totalorder %s12, 0
      %p121 = por %p119, %p120
      %p122 = scmp.ne.s32.totalorder %s114, %s116
      %p123 = scmp.eq.s32.totalorder %s17, 3
      %p124 = por %p122, %p123
      %p125 = scmp.ne.s32.totalorder %s116, %s117
      %p126 = scmp.eq.s32.totalorder %s17, 0
      %p127 = por %p125, %p126
      %p128 = scmp.ne.s32.totalorder %s116, %s117
      %p129 = scmp.eq.s32.totalorder %s18, 3
      %p130 = por %p128, %p129
      %p132 = scmp.ne.s32.totalorder %s117, %s131
      %p133 = scmp.eq.s32.totalorder %s18, 0
      %p134 = por %p132, %p133
      %p135 = scmp.le.s32.totalorder 1, %s12
      %p136 = scmp.lt.s32.totalorder %s12, 5
      %p137 = pnand %p135, %p136
      %p138 = pneg %p137
      // Predicated region
      $region9: #{tpu_custom_call.1} parent=5 // pred_check
        _
      $region10: #{tpu_custom_call.1} parent=5 // pred_check_branch
        %140 = sbr.rel (%p137) target = $region12
      $region11: #{tpu_custom_call.1} parent=5 // pred_region
        %s141 = ssub.s32 %s12, 1
        // Predicated region
        $region13: #{tpu_custom_call.1} parent=11 // pred_check
          %p142 = pneg %p85
        $region14: #{tpu_custom_call.1} parent=11 // pred_check_branch
          %144 = sbr.rel (%p142) target = $region16
        $region15: #{tpu_custom_call.1} parent=11 // pred_region
          _
        $region16: #{tpu_custom_call.1} parent=11 // pred_fallthru
          _
        // Predicated region
        $region17: #{tpu_custom_call.1} parent=11 // pred_check
          %p145 = pneg %p106
        $region18: #{tpu_custom_call.1} parent=11 // pred_check_branch
          %147 = sbr.rel (%p145) target = $region20
        $region19: #{tpu_custom_call.1} parent=11 // pred_region
          %s149 = ssub.s32 3072, 3072
          %150 = vsyncadd [#allocation3], %s149
          %s151 = sshll.u32 [#allocation2], 4
          %s152 = int_to_ptr.vmem [resolvable:$true] %s151
          %157 = dma.hbm_to_vmem [thread:$0]  %s3, 3072, %s152, [#allocation3], 64, 64, 4
        $region20: #{tpu_custom_call.1} parent=11 // pred_fallthru
          _
      $region12: #{tpu_custom_call.1} parent=5 // pred_fallthru
        _
      %p158 = scmp.lt.s32.totalorder %s12, 4
      // Predicated region
      $region21: #{tpu_custom_call.1} parent=5 // pred_check
        %p159 = pneg %p158
      $region22: #{tpu_custom_call.1} parent=5 // pred_check_branch
        %161 = sbr.rel (%p159) target = $region24
      $region23: #{tpu_custom_call.1} parent=5 // pred_region
        // Predicated region
        $region25: #{tpu_custom_call.1} parent=23 // pred_check
          %p162 = pneg %p32
        $region26: #{tpu_custom_call.1} parent=23 // pred_check_branch
          %164 = sbr.rel (%p162) target = $region28
        $region27: #{tpu_custom_call.1} parent=23 // pred_region
          %p165 = scmp.lt.s32.totalorder %s12, 3
          %s166 = scalar_select %p165, %s12, 3
          %s167 = smul.addr %s166, 2
          %s168 = smul.addr %s167, 8
          %s169 = scalar_lea.vmem %s0, %s168
        $region28: #{tpu_custom_call.1} parent=23 // pred_fallthru
          _
        // Predicated region
        $region29: #{tpu_custom_call.1} parent=23 // pred_check
          %p170 = pneg %p58
        $region30: #{tpu_custom_call.1} parent=23 // pred_check_branch
          %172 = sbr.rel (%p170) target = $region32
        $region31: #{tpu_custom_call.1} parent=23 // pred_region
          %p173 = scmp.lt.s32.totalorder %s12, 3
          %s174 = scalar_select %p173, %s12, 3
          %s175 = smul.addr %s174, 2
          %s176 = smul.addr %s175, 4
          %s177 = scalar_lea.vmem %s1, %s176
        $region32: #{tpu_custom_call.1} parent=23 // pred_fallthru
          _
      $region24: #{tpu_custom_call.1} parent=5 // pred_fallthru
        _
      %p178 = scmp.le.s32.totalorder 1, %s12
      %p179 = scmp.lt.s32.totalorder %s12, 5
      %p180 = pnand %p178, %p179
      %p181 = pneg %p180
      // Predicated region
      $region33: #{tpu_custom_call.1} parent=5 // pred_check
        _
      $region34: #{tpu_custom_call.1} parent=5 // pred_check_branch
        %183 = sbr.rel (%p180) target = $region36
      $region35: #{tpu_custom_call.1} parent=5 // pred_region
        %s184 = ssub.s32 %s12, 1
        // Predicated region
        $region37: #{tpu_custom_call.1} parent=35 // pred_check
          %p185 = pneg %p106
        $region38: #{tpu_custom_call.1} parent=35 // pred_check_branch
          %187 = sbr.rel (%p185) target = $region40
        $region39: #{tpu_custom_call.1} parent=35 // pred_region
          %188 = dma.done [#allocation3], 3072
        $region40: #{tpu_custom_call.1} parent=35 // pred_fallthru
          _
        %p189 = scmp.lt.s32.totalorder %s17, 3
        %s190 = scalar_select %p189, %s17, 3
        %s191 = smul.addr %s190, 2
        %s192 = smul.addr %s191, 8
        %s193 = scalar_lea.vmem %s0, %s192
        %p194 = pneg %p38
        %p195 = pneg %p35
        %p196 = scmp.lt.s32.totalorder %s17, 3
        %s197 = scalar_select %p196, %s17, 3
        %s198 = smul.addr %s197, 2
        %s199 = smul.addr %s198, 4
        %s200 = scalar_lea.vmem %s1, %s199
        %p201 = pneg %p64
        %p202 = pneg %p61
        %p203 = pneg %p85
        %p204 = pneg %p82
        %p205 = pneg %p106
        %p206 = pneg %p103
        %p207 = pneg %p127
        %p208 = pneg %p124
        %p209 = scmp.lt.s32.totalorder %s17, 3
        %s210 = scalar_select %p209, %s17, 3
        %s211 = smul.addr %s210, 2
        %s212 = smul.addr %s211, 8
        %s213 = scalar_lea.vmem %s0, %s212
        %p214 = scmp.lt.s32.totalorder %s17, 3
        %s215 = scalar_select %p214, %s17, 3
        %s216 = smul.addr %s215, 2
        %s217 = smul.addr %s216, 4
        %s218 = scalar_lea.vmem %s1, %s217
        %v220 = vld [vmem:[%s213] sm:$0xff]
        %v221 = vld [vmem:[%s213 + $0x8] sm:$0xff]
        %v222 = vld [vmem:[%s218] sm:$0xf]
        %v223 = vld [vmem:[%s218 + $0x4] sm:$0xf]
        %v224 = vunpack.c.l.bf16 %v222
        %v225 = vunpack.c.l.bf16 %v223
        %vm226 = vcmask 130048
        %v227 = vsel %vm226, %v224, 0.0
        %228 = vadd.xlane.f32.xlu0 %v227
        %v229 = vpop.xlane.xlu0 %228
        %v230 = vsel %vm226, %v225, 0.0
        %231 = vadd.xlane.f32.xlu0 %v230
        %v232 = vpop.xlane.xlu0 %231
        %v233 = vld [vmem:[%s2] sm:$0x1]
        %v234 = vld [vmem:[%s2 + $0x1] sm:$0x1]
        %v235 = vld [vmem:[%s2 + $0x2] sm:$0x1]
        %v236 = vld [vmem:[%s2 + $0x3] sm:$0x1]
        %v237 = vld [vmem:[%s2 + $0x4] sm:$0x1]
        %v238 = vld [vmem:[%s2 + $0x5] sm:$0x1]
        %v239 = vld [vmem:[%s2 + $0x6] sm:$0x1]
        %v240 = vld [vmem:[#allocation2] sm:$0xf]
        %v241 = vld [vmem:[#allocation2 + $0x4] sm:$0xf]
        %v242 = vld [vmem:[#allocation2 + $0x8] sm:$0xf]
        %v243 = vld [vmem:[#allocation2 + $0xc] sm:$0xf]
        %v244 = vld [vmem:[#allocation2 + $0x10] sm:$0xf]
        %v245 = vld [vmem:[#allocation2 + $0x14] sm:$0xf]
        %v246 = vld [vmem:[#allocation2 + $0x18] sm:$0xf]
        %v247 = vld [vmem:[#allocation2 + $0x1c] sm:$0xf]
        %v248 = vld [vmem:[#allocation2 + $0x20] sm:$0xf]
        %v249 = vld [vmem:[#allocation2 + $0x24] sm:$0xf]
        %v250 = vld [vmem:[#allocation2 + $0x28] sm:$0xf]
        %v251 = vld [vmem:[#allocation2 + $0x2c] sm:$0xf]
        %v252 = vld [vmem:[#allocation2 + $0x30] sm:$0xf]
        %v253 = vld [vmem:[#allocation2 + $0x34] sm:$0xf]
        %v254 = vld [vmem:[#allocation2 + $0x38] sm:$0xf]
        %v255 = vld [vmem:[#allocation2 + $0x3c] sm:$0xf]
        %v256 = vld [vmem:[#allocation2 + $0x40] sm:$0xf]
        %v257 = vld [vmem:[#allocation2 + $0x44] sm:$0xf]
        %v258 = vld [vmem:[#allocation2 + $0x48] sm:$0xf]
        %v259 = vld [vmem:[#allocation2 + $0x4c] sm:$0xf]
        %v260 = vld [vmem:[#allocation2 + $0x50] sm:$0xf]
        %v261 = vld [vmem:[#allocation2 + $0x54] sm:$0xf]
        %v262 = vld [vmem:[#allocation2 + $0x58] sm:$0xf]
        %v263 = vld [vmem:[#allocation2 + $0x5c] sm:$0xf]
        %v264 = vld [vmem:[#allocation2 + $0x60] sm:$0xf]
        %v265 = vld [vmem:[#allocation2 + $0x64] sm:$0xf]
        %v266 = vld [vmem:[#allocation2 + $0x68] sm:$0xf]
        %v267 = vld [vmem:[#allocation2 + $0x6c] sm:$0xf]
        %v268 = vld [vmem:[#allocation2 + $0x70] sm:$0xf]
        %v269 = vld [vmem:[#allocation2 + $0x74] sm:$0xf]
        %v270 = vld [vmem:[#allocation2 + $0x78] sm:$0xf]
        %v271 = vld [vmem:[#allocation2 + $0x7c] sm:$0xf]
        %v272 = vld [vmem:[#allocation2 + $0x80] sm:$0xf]
        %v273 = vld [vmem:[#allocation2 + $0x84] sm:$0xf]
        %v274 = vld [vmem:[#allocation2 + $0x88] sm:$0xf]
        %v275 = vld [vmem:[#allocation2 + $0x8c] sm:$0xf]
        %v276 = vld [vmem:[#allocation2 + $0x90] sm:$0xf]
        %v277 = vld [vmem:[#allocation2 + $0x94] sm:$0xf]
        %v278 = vld [vmem:[#allocation2 + $0x98] sm:$0xf]
        %v279 = vld [vmem:[#allocation2 + $0x9c] sm:$0xf]
        %v280 = vld [vmem:[#allocation2 + $0xa0] sm:$0xf]
        %v281 = vld [vmem:[#allocation2 + $0xa4] sm:$0xf]
        %v282 = vld [vmem:[#allocation2 + $0xa8] sm:$0xf]
        %v283 = vld [vmem:[#allocation2 + $0xac] sm:$0xf]
        %v284 = vld [vmem:[#allocation2 + $0xb0] sm:$0xf]
        %v285 = vld [vmem:[#allocation2 + $0xb4] sm:$0xf]
        %v286 = vld [vmem:[#allocation2 + $0xb8] sm:$0xf]
        %v287 = vld [vmem:[#allocation2 + $0xbc] sm:$0xf]
        %v288 = vadd.f32 %v229, 1.0
        %v289 = vadd.f32 %v232, 1.0
        %v290 = vrsqrt.pop %v288
        %v291 = vrsqrt.pop %v289
        %293 = vset.pattern.permute.xlu0 0
        %294 = vperm.xlu0 %293, %v220
        %v295 = vpop.permute.xlu0 %294
        %298 = vset.pattern.permute.xlu0 0
        %299 = vperm.xlu0 %298, %v221
        %v300 = vpop.permute.xlu0 %299
        %v302 = vlaneseq
        %v303 = vshrl.u32 %v302, 7
        %v304 = vsub.s32 0, %v303
        %v305 = vrot.slane %v233, %v304
        %v306 = vmul.f32 %v295, %v305
        %v307 = vmul.f32 %v300, %v305
        %308 = vset.pattern.permute.xlu0 1
        %309 = vperm.xlu0 %308, %v220
        %v310 = vpop.permute.xlu0 %309
        %312 = vset.pattern.permute.xlu0 1
        %313 = vperm.xlu0 %312, %v221
        %v314 = vpop.permute.xlu0 %313
        %v316 = vlaneseq
        %v317 = vshrl.u32 %v316, 7
        %v318 = vsub.s32 0, %v317
        %v319 = vrot.slane %v234, %v318
        %v320 = vmul.f32 %v310, %v319
        %v321 = vmul.f32 %v314, %v319
        %v322 = vadd.f32 %v306, %v320
        %v323 = vadd.f32 %v307, %v321
        %v324 = vmul.f32 %v290, %v322
        %v325 = vmul.f32 %v291, %v323
        %v326 = vpack.c.bf16 %v325, %v324
        %v329 = vunpack.c.l.b16 %v222
        %v330 = vunpack.c.l.b16 %v223
        %v331 = vpack.c.b16 %v330, %v329
        %v333 = vsel %vm226, %v331, 0
        %335 = vmatprep.subr.bf16.mxu0 0
        %336 = vmatpush1.bf16.msra.mxu0 0
        %337 = vmatprep.subr.bf16.mxu0 0
        %338 = vmatpush1.bf16.msra.mxu0 0
        %339 = vmatprep.subr.bf16.mxu0 0
        %340 = vmatpush1.bf16.msra.mxu0 0
        %341 = vmatprep.subr.bf16.mxu0 0
        %342 = vmatpush1.bf16.msra.mxu0 0
        %343 = vmatprep.subr.bf16.mxu0 0
        %344 = vmatpush1.bf16.msra.mxu0 0
        %345 = vmatprep.subr.bf16.mxu0 0
        %346 = vmatpush1.bf16.msra.mxu0 0
        %347 = vmatprep.subr.bf16.mxu0 0
        %348 = vmatpush1.bf16.msra.mxu0 0
        %349 = vmatprep.subr.bf16.mxu0 0
        %350 = vmatpush1.bf16.msra.mxu0 %v326
        %351 = vmatprep.subr.bf16.mxu0 0
        %352 = vmatpush2.bf16.msra.mxu0 0
        %353 = vmatprep.subr.bf16.mxu0 0
        %354 = vmatpush2.bf16.msra.mxu0 0
        %355 = vmatprep.subr.bf16.mxu0 0
        %356 = vmatpush2.bf16.msra.mxu0 0
        %357 = vmatprep.subr.bf16.mxu0 0
        %358 = vmatpush2.bf16.msra.mxu0 0
        %359 = vmatprep.subr.bf16.mxu0 0
        %360 = vmatpush2.bf16.msra.mxu0 0
        %361 = vmatprep.subr.bf16.mxu0 0
        %362 = vmatpush2.bf16.msra.mxu0 0
        %363 = vmatprep.subr.bf16.mxu0 0
        %364 = vmatpush2.bf16.msra.mxu0 0
        %365 = vmatprep.subr.bf16.mxu0 0
        %366 = vmatpush2.bf16.msra.mxu0 0
        %367 = vmatprep.mubr.bf16.mxu0 0
        %368 = vmatmul.mubr.bf16.gmra.mxu0 %v333
        %v369 = vpop.f32.mrf.mxu0
        %v370 = vadd.f32 %v324, %v369
        %v371 = vpop.f32.mrf.mxu0
        %v372 = vpop.f32.mrf.mxu0
        %v373 = vadd.f32 %v325, %v372
        %v374 = vpop.f32.mrf.mxu0
        %375 = vdwg.mxu0
        %v376 = vmul.f32 %v290, %v370
        %v377 = vmul.f32 %v291, %v373
        %v378 = vlaneseq
        %v379 = vshrl.u32 %v378, 7
        %v380 = vsub.s32 0, %v379
        %v381 = vrot.slane %v235, %v380
        %v382 = vadd.f32 %v376, %v381
        %v383 = vadd.f32 %v377, %v381
        %v384 = vmax.f32 %v382, 0.0
        %v385 = vmax.f32 %v383, 0.0
        %v386 = vmax.f32 %v229, 1.0
        %v387 = vmax.f32 %v232, 1.0
        %v388 = vrcp.pop %v386
        %v389 = vrcp.pop %v387
        %v390 = vpack.c.bf16 %v385, %v384
        %391 = vmatprep.subr.bf16.mxu0 0
        %392 = vmatpush1.bf16.msra.mxu0 0
        %393 = vmatprep.subr.bf16.mxu0 0
        %394 = vmatpush1.bf16.msra.mxu0 0
        %395 = vmatprep.subr.bf16.mxu0 0
        %396 = vmatpush1.bf16.msra.mxu0 0
        %397 = vmatprep.subr.bf16.mxu0 0
        %398 = vmatpush1.bf16.msra.mxu0 0
        %399 = vmatprep.subr.bf16.mxu0 0
        %400 = vmatpush1.bf16.msra.mxu0 0
        %401 = vmatprep.subr.bf16.mxu0 0
        %402 = vmatpush1.bf16.msra.mxu0 0
        %403 = vmatprep.subr.bf16.mxu0 0
        %404 = vmatpush1.bf16.msra.mxu0 0
        %405 = vmatprep.subr.bf16.mxu0 0
        %406 = vmatpush1.bf16.msra.mxu0 %v390
        %407 = vmatprep.subr.bf16.mxu0 0
        %408 = vmatpush2.bf16.msra.mxu0 0
        %409 = vmatprep.subr.bf16.mxu0 0
        %410 = vmatpush2.bf16.msra.mxu0 0
        %411 = vmatprep.subr.bf16.mxu0 0
        %412 = vmatpush2.bf16.msra.mxu0 0
        %413 = vmatprep.subr.bf16.mxu0 0
        %414 = vmatpush2.bf16.msra.mxu0 0
        %415 = vmatprep.subr.bf16.mxu0 0
        %416 = vmatpush2.bf16.msra.mxu0 0
        %417 = vmatprep.subr.bf16.mxu0 0
        %418 = vmatpush2.bf16.msra.mxu0 0
        %419 = vmatprep.subr.bf16.mxu0 0
        %420 = vmatpush2.bf16.msra.mxu0 0
        %421 = vmatprep.subr.bf16.mxu0 0
        %422 = vmatpush2.bf16.msra.mxu0 0
        %423 = vmatprep.mubr.bf16.mxu0 0
        %424 = vmatmul.mubr.bf16.gmra.mxu0 %v333
        %v425 = vpop.f32.mrf.mxu0
        %v426 = vadd.f32 0.0, %v425
        %v427 = vpop.f32.mrf.mxu0
        %v428 = vpop.f32.mrf.mxu0
        %v429 = vadd.f32 0.0, %v428
        %v430 = vpop.f32.mrf.mxu0
        %431 = vdwg.mxu0
        %v432 = vmul.f32 %v426, %v388
        %v433 = vmul.f32 %v429, %v389
        %v434 = vpack.c.bf16 %v433, %v432
        %v435 = vlaneseq
        %v436 = vshrl.u32 %v435, 7
        %v437 = vsub.s32 0, %v436
        %v438 = vrot.slane %v236, %v437
        %v455 = vunpack.c.l.b16 %v240
        %v456 = vunpack.c.l.b16 %v241
        %v457 = vunpack.c.l.b16 %v242
        %v458 = vunpack.c.l.b16 %v243
        %v459 = vunpack.c.l.b16 %v244
        %v460 = vunpack.c.l.b16 %v245
        %v461 = vunpack.c.l.b16 %v246
        %v462 = vunpack.c.l.b16 %v247
        %v463 = vunpack.c.l.b16 %v248
        %v464 = vunpack.c.l.b16 %v249
        %v465 = vunpack.c.l.b16 %v250
        %v466 = vunpack.c.l.b16 %v251
        %v467 = vunpack.c.l.b16 %v252
        %v468 = vunpack.c.l.b16 %v253
        %v469 = vunpack.c.l.b16 %v254
        %v470 = vunpack.c.l.b16 %v255
        %v471 = vpack.c.b16 %v456, %v455
        %v472 = vpack.c.b16 %v458, %v457
        %v473 = vpack.c.b16 %v460, %v459
        %v474 = vpack.c.b16 %v462, %v461
        %v475 = vpack.c.b16 %v464, %v463
        %v476 = vpack.c.b16 %v466, %v465
        %v477 = vpack.c.b16 %v468, %v467
        %v478 = vpack.c.b16 %v470, %v469
        %487 = vmatprep.subr.bf16.mxu0 0
        %488 = vmatpush1.bf16.msra.mxu0 %v478
        %489 = vmatprep.subr.bf16.mxu0 0
        %490 = vmatpush1.bf16.msra.mxu0 %v477
        %491 = vmatprep.subr.bf16.mxu0 0
        %492 = vmatpush1.bf16.msra.mxu0 %v476
        %493 = vmatprep.subr.bf16.mxu0 0
        %494 = vmatpush1.bf16.msra.mxu0 %v475
        %495 = vmatprep.subr.bf16.mxu0 0
        %496 = vmatpush1.bf16.msra.mxu0 %v474
        %497 = vmatprep.subr.bf16.mxu0 0
        %498 = vmatpush1.bf16.msra.mxu0 %v473
        %499 = vmatprep.subr.bf16.mxu0 0
        %500 = vmatpush1.bf16.msra.mxu0 %v472
        %501 = vmatprep.subr.bf16.mxu0 0
        %502 = vmatpush1.bf16.msra.mxu0 %v471
        %503 = vmatprep.subr.bf16.mxu0 0
        %504 = vmatpush2.bf16.msra.mxu0 0
        %505 = vmatprep.subr.bf16.mxu0 0
        %506 = vmatpush2.bf16.msra.mxu0 0
        %507 = vmatprep.subr.bf16.mxu0 0
        %508 = vmatpush2.bf16.msra.mxu0 0
        %509 = vmatprep.subr.bf16.mxu0 0
        %510 = vmatpush2.bf16.msra.mxu0 0
        %511 = vmatprep.subr.bf16.mxu0 0
        %512 = vmatpush2.bf16.msra.mxu0 0
        %513 = vmatprep.subr.bf16.mxu0 0
        %514 = vmatpush2.bf16.msra.mxu0 0
        %515 = vmatprep.subr.bf16.mxu0 0
        %516 = vmatpush2.bf16.msra.mxu0 0
        %517 = vmatprep.subr.bf16.mxu0 0
        %518 = vmatpush2.bf16.msra.mxu0 0
        %519 = vmatprep.mubr.bf16.mxu0 0
        %520 = vmatmul.mubr.bf16.gmra.mxu0 %v434
        %v521 = vpop.f32.mrf.mxu0
        %v522 = vadd.f32 %v438, %v521
        %v523 = vpop.f32.mrf.mxu0
        %v524 = vpop.f32.mrf.mxu0
        %v525 = vadd.f32 %v438, %v524
        %v526 = vpop.f32.mrf.mxu0
        %527 = vdwg.mxu0
        %v544 = vunpack.c.l.b16 %v256
        %v545 = vunpack.c.l.b16 %v257
        %v546 = vunpack.c.l.b16 %v258
        %v547 = vunpack.c.l.b16 %v259
        %v548 = vunpack.c.l.b16 %v260
        %v549 = vunpack.c.l.b16 %v261
        %v550 = vunpack.c.l.b16 %v262
        %v551 = vunpack.c.l.b16 %v263
        %v552 = vunpack.c.l.b16 %v264
        %v553 = vunpack.c.l.b16 %v265
        %v554 = vunpack.c.l.b16 %v266
        %v555 = vunpack.c.l.b16 %v267
        %v556 = vunpack.c.l.b16 %v268
        %v557 = vunpack.c.l.b16 %v269
        %v558 = vunpack.c.l.b16 %v270
        %v559 = vunpack.c.l.b16 %v271
        %v560 = vpack.c.b16 %v545, %v544
        %v561 = vpack.c.b16 %v547, %v546
        %v562 = vpack.c.b16 %v549, %v548
        %v563 = vpack.c.b16 %v551, %v550
        %v564 = vpack.c.b16 %v553, %v552
        %v565 = vpack.c.b16 %v555, %v554
        %v566 = vpack.c.b16 %v557, %v556
        %v567 = vpack.c.b16 %v559, %v558
        %576 = vmatprep.subr.bf16.mxu0 0
        %577 = vmatpush1.bf16.msra.mxu0 %v567
        %578 = vmatprep.subr.bf16.mxu0 0
        %579 = vmatpush1.bf16.msra.mxu0 %v566
        %580 = vmatprep.subr.bf16.mxu0 0
        %581 = vmatpush1.bf16.msra.mxu0 %v565
        %582 = vmatprep.subr.bf16.mxu0 0
        %583 = vmatpush1.bf16.msra.mxu0 %v564
        %584 = vmatprep.subr.bf16.mxu0 0
        %585 = vmatpush1.bf16.msra.mxu0 %v563
        %586 = vmatprep.subr.bf16.mxu0 0
        %587 = vmatpush1.bf16.msra.mxu0 %v562
        %588 = vmatprep.subr.bf16.mxu0 0
        %589 = vmatpush1.bf16.msra.mxu0 %v561
        %590 = vmatprep.subr.bf16.mxu0 0
        %591 = vmatpush1.bf16.msra.mxu0 %v560
        %592 = vmatprep.subr.bf16.mxu0 0
        %593 = vmatpush2.bf16.msra.mxu0 0
        %594 = vmatprep.subr.bf16.mxu0 0
        %595 = vmatpush2.bf16.msra.mxu0 0
        %596 = vmatprep.subr.bf16.mxu0 0
        %597 = vmatpush2.bf16.msra.mxu0 0
        %598 = vmatprep.subr.bf16.mxu0 0
        %599 = vmatpush2.bf16.msra.mxu0 0
        %600 = vmatprep.subr.bf16.mxu0 0
        %601 = vmatpush2.bf16.msra.mxu0 0
        %602 = vmatprep.subr.bf16.mxu0 0
        %603 = vmatpush2.bf16.msra.mxu0 0
        %604 = vmatprep.subr.bf16.mxu0 0
        %605 = vmatpush2.bf16.msra.mxu0 0
        %606 = vmatprep.subr.bf16.mxu0 0
        %607 = vmatpush2.bf16.msra.mxu0 0
        %608 = vmatprep.mubr.bf16.mxu0 0
        %609 = vmatmul.mubr.bf16.gmra.mxu0 %v390
        %v610 = vpop.f32.mrf.mxu0
        %v611 = vadd.f32 0.0, %v610
        %v612 = vpop.f32.mrf.mxu0
        %v613 = vpop.f32.mrf.mxu0
        %v614 = vadd.f32 0.0, %v613
        %v615 = vpop.f32.mrf.mxu0
        %616 = vdwg.mxu0
        %v617 = vadd.f32 %v522, %v611
        %v618 = vadd.f32 %v525, %v614
        %v619 = vpack.c.bf16 %v618, %v617
        %v620 = vlaneseq
        %v621 = vshrl.u32 %v620, 7
        %v622 = vsub.s32 0, %v621
        %v623 = vrot.slane %v237, %v622
        %v640 = vunpack.c.l.b16 %v272
        %v641 = vunpack.c.l.b16 %v273
        %v642 = vunpack.c.l.b16 %v274
        %v643 = vunpack.c.l.b16 %v275
        %v644 = vunpack.c.l.b16 %v276
        %v645 = vunpack.c.l.b16 %v277
        %v646 = vunpack.c.l.b16 %v278
        %v647 = vunpack.c.l.b16 %v279
        %v648 = vunpack.c.l.b16 %v280
        %v649 = vunpack.c.l.b16 %v281
        %v650 = vunpack.c.l.b16 %v282
        %v651 = vunpack.c.l.b16 %v283
        %v652 = vunpack.c.l.b16 %v284
        %v653 = vunpack.c.l.b16 %v285
        %v654 = vunpack.c.l.b16 %v286
        %v655 = vunpack.c.l.b16 %v287
        %v656 = vpack.c.b16 %v641, %v640
        %v657 = vpack.c.b16 %v643, %v642
        %v658 = vpack.c.b16 %v645, %v644
        %v659 = vpack.c.b16 %v647, %v646
        %v660 = vpack.c.b16 %v649, %v648
        %v661 = vpack.c.b16 %v651, %v650
        %v662 = vpack.c.b16 %v653, %v652
        %v663 = vpack.c.b16 %v655, %v654
        %672 = vmatprep.subr.bf16.mxu0 0
        %673 = vmatpush1.bf16.msra.mxu0 %v663
        %674 = vmatprep.subr.bf16.mxu0 0
        %675 = vmatpush1.bf16.msra.mxu0 %v662
        %676 = vmatprep.subr.bf16.mxu0 0
        %677 = vmatpush1.bf16.msra.mxu0 %v661
        %678 = vmatprep.subr.bf16.mxu0 0
        %679 = vmatpush1.bf16.msra.mxu0 %v660
        %680 = vmatprep.subr.bf16.mxu0 0
        %681 = vmatpush1.bf16.msra.mxu0 %v659
        %682 = vmatprep.subr.bf16.mxu0 0
        %683 = vmatpush1.bf16.msra.mxu0 %v658
        %684 = vmatprep.subr.bf16.mxu0 0
        %685 = vmatpush1.bf16.msra.mxu0 %v657
        %686 = vmatprep.subr.bf16.mxu0 0
        %687 = vmatpush1.bf16.msra.mxu0 %v656
        %688 = vmatprep.subr.bf16.mxu0 0
        %689 = vmatpush2.bf16.msra.mxu0 0
        %690 = vmatprep.subr.bf16.mxu0 0
        %691 = vmatpush2.bf16.msra.mxu0 0
        %692 = vmatprep.subr.bf16.mxu0 0
        %693 = vmatpush2.bf16.msra.mxu0 0
        %694 = vmatprep.subr.bf16.mxu0 0
        %695 = vmatpush2.bf16.msra.mxu0 0
        %696 = vmatprep.subr.bf16.mxu0 0
        %697 = vmatpush2.bf16.msra.mxu0 0
        %698 = vmatprep.subr.bf16.mxu0 0
        %699 = vmatpush2.bf16.msra.mxu0 0
        %700 = vmatprep.subr.bf16.mxu0 0
        %701 = vmatpush2.bf16.msra.mxu0 0
        %702 = vmatprep.subr.bf16.mxu0 0
        %703 = vmatpush2.bf16.msra.mxu0 0
        %704 = vmatprep.mubr.bf16.mxu0 0
        %705 = vmatmul.mubr.bf16.gmra.mxu0 %v619
        %v706 = vpop.f32.mrf.mxu0
        %v707 = vadd.f32 %v623, %v706
        %v708 = vpop.f32.mrf.mxu0
        %v709 = vpop.f32.mrf.mxu0
        %v710 = vadd.f32 %v623, %v709
        %v711 = vpop.f32.mrf.mxu0
        %712 = vdwg.mxu0
        %v713 = vmax.f32 %v707, 0.0
        %v714 = vmax.f32 %v710, 0.0
        %v715 = vadd.f32 %v713, %v714
        %v716 = vrot.slane %v715, 4
        %v717 = vadd.f32 %v715, %v716
        %v718 = vrot.slane %v717, 2
        %v719 = vadd.f32 %v717, %v718
        %v720 = vrot.slane %v719, 1
        %v721 = vadd.f32 %v719, %v720
        %v722 = vmul.f32 %v721, %v238
        %vm723 = vcmask 1040384
        %v724 = vsel %vm723, %v722, 0.0
        %725 = vadd.xlane.f32.xlu0 %v724
        %v726 = vpop.xlane.xlu0 %725
        %v727 = vmul.f32 %v239, 16.0
        %v728 = vadd.f32 %v726, %v727
        %p729 = scmp.eq.s32.totalorder %s17, 0
        // Predicated region
        $region41: #{tpu_custom_call.1} parent=35 // pred_check
          %p730 = pneg %p729
        $region42: #{tpu_custom_call.1} parent=35 // pred_check_branch
          %732 = sbr.rel (%p730) target = $region44
        $region43: #{tpu_custom_call.1} parent=35 // pred_region
          %733 = vst [vmem:[#allocation5] sm:$0x1] 0.0
        $region44: #{tpu_custom_call.1} parent=35 // pred_fallthru
          _
        %v734 = vlaneseq
        %v735 = vand.u32 %v734, 127
        %v736 = vstv %s17
        %vm737 = vcmp.eq.s32.totalorder %v735, %v736
        %v738 = vld [vmem:[#allocation5] sm:$0x1]
        %740 = vset.pattern.permute.xlu0 0
        %741 = vperm.xlu0 %740, %v728
        %v742 = vpop.permute.xlu0 %741
        %v744 = vsel %vm737, %v742, %v738
        %745 = vst [vmem:[#allocation5] sm:$0x1] %v744
        // Predicated region
        $region45: #{tpu_custom_call.1} parent=35 // pred_check
          %p746 = pneg %p124
        $region46: #{tpu_custom_call.1} parent=35 // pred_check_branch
          %748 = sbr.rel (%p746) target = $region48
        $region47: #{tpu_custom_call.1} parent=35 // pred_region
          %s750 = ssub.s32 16, 16
          %751 = vsyncadd [#allocation4], %s750
          %s753 = sshll.u32 [#allocation5], 4
          %s754 = int_to_ptr.vmem [resolvable:$true] %s753
          %756 = dma.vmem_to_hbm [thread:$0]  %s754, 16, %s4, [#allocation4]
        $region48: #{tpu_custom_call.1} parent=35 // pred_fallthru
          _
        // Predicated region
        $region49: #{tpu_custom_call.1} parent=35 // pred_check
          %p757 = pneg %p124
        $region50: #{tpu_custom_call.1} parent=35 // pred_check_branch
          %759 = sbr.rel (%p757) target = $region52
        $region51: #{tpu_custom_call.1} parent=35 // pred_region
          %760 = dma.done [#allocation4], 16
        $region52: #{tpu_custom_call.1} parent=35 // pred_fallthru
          _
      $region36: #{tpu_custom_call.1} parent=5 // pred_fallthru
        _
      %p761 = scmp.le.s32.totalorder 2, %s12
      // Predicated region
      $region53: #{tpu_custom_call.1} parent=5 // pred_check
        %p762 = pneg %p761
      $region54: #{tpu_custom_call.1} parent=5 // pred_check_branch
        %764 = sbr.rel (%p762) target = $region56
      $region55: #{tpu_custom_call.1} parent=5 // pred_region
        %s765 = ssub.s32 %s12, 2
      $region56: #{tpu_custom_call.1} parent=5 // pred_fallthru
        _
    $region6: #{tpu_custom_call.1} parent=1 // loop_footer
      %s16 = sadd.s32 1, %s12
    $region7: #{tpu_custom_call.1} parent=1 // loop_footer_branch
      %11 = sbr.rel target = $region3
    $region8: #{tpu_custom_call.1} parent=1 // loop_exit
      _
    %766 = vsyncpa [#allocation3], 1
    %s767 = scalar_lea.sflag [#allocation3], 1
    %768 = vsyncpa %s767, 1
    %769 = vsyncpa [#allocation4], 1
    %s770 = scalar_lea.sflag [#allocation4], 1
    %771 = vsyncpa %s770, 1

</llo_original>
